<compile_context>
chip_gen: v7x
topology: tpu7x:2x2x1
jax: 0.10.0
libtpu: 0.0.40
codegen_flags: <defaults>
</compile_context>

<pallas_src>
import functools

import numpy as np
import jax
import jax.numpy as jnp
from jax import lax
from jax.experimental import pallas as pl
from jax.experimental.pallas import tpu as pltpu


# --------------------------------------------------------------------------
# Kernels
# --------------------------------------------------------------------------

def _matmul_part(x_ref, w_ref, mxu_dtype):
    """One K-step partial product: x (bb, bk) @ w (bn, bk)^T -> (bb, bn) f32."""
    x = x_ref[...]
    w = w_ref[...]
    if mxu_dtype is not None:
        # In-kernel cast (VPU) right before the dot: avoids a separate XLA
        # convert pass over the full weight in HBM on every call.
        x = x.astype(mxu_dtype)
        w = w.astype(mxu_dtype)
    return lax.dot_general(
        x, w,
        dimension_numbers=(((1,), (1,)), ((), ())),
        preferred_element_type=jnp.float32)


def _finalize(acc, b_ref, scale, lr_multiplier, negative_slope):
    y = acc * scale + b_ref[...].astype(jnp.float32) * lr_multiplier
    if negative_slope != 1.0:            # 'linear' -> identity, skip the select
        y = jnp.where(y >= 0.0, y, negative_slope * y)
    return y


def _dense_kernel_inplace(x_ref, w_ref, b_ref, o_ref, *, scale, lr_multiplier,
                          negative_slope, mxu_dtype):
    """f32 output path: accumulate directly into o_ref (resident across K)."""
    k = pl.program_id(2)
    part = _matmul_part(x_ref, w_ref, mxu_dtype)

    @pl.when(k == 0)
    def _():
        o_ref[...] = part

    @pl.when(k > 0)
    def _():
        o_ref[...] += part

    @pl.when(k == pl.num_programs(2) - 1)
    def _():
        o_ref[...] = _finalize(o_ref[...], b_ref, scale, lr_multiplier,
                               negative_slope).astype(o_ref.dtype)


def _dense_kernel_scratch(x_ref, w_ref, b_ref, o_ref, acc_ref, *, scale,
                          lr_multiplier, negative_slope, mxu_dtype):
    """Narrow output dtypes: f32 VMEM accumulator, cast on the final K step."""
    k = pl.program_id(2)
    part = _matmul_part(x_ref, w_ref, mxu_dtype)

    @pl.when(k == 0)
    def _():
        acc_ref[...] = part

    @pl.when(k > 0)
    def _():
        acc_ref[...] += part

    @pl.when(k == pl.num_programs(2) - 1)
    def _():
        o_ref[...] = _finalize(acc_ref[...], b_ref, scale, lr_multiplier,
                               negative_slope).astype(o_ref.dtype)


# --------------------------------------------------------------------------
# Tiling / VMEM helpers
# --------------------------------------------------------------------------

def _aligned_divisor(dim, target, aligns):
    """Largest divisor of `dim` that is a multiple of some a in `aligns`
    (coarser alignments tried first) and <= target. None if none exists."""
    for align in aligns:
        t = (min(target, dim) // align) * align
        while t >= align:
            if dim % t == 0:
                return t
            t -= align
    return None


def _choose_block(dim, target, aligns):
    if dim <= target:
        return dim
    d = _aligned_divisor(dim, target, aligns)
    return dim if d is None else d


def _vmem_budget_bytes():
    """Physical VMEM per TensorCore minus headroom (device-aware; v7x=64MiB)."""
    cap = 64 * 1024 * 1024            # conservative default = v7x per-TC VMEM
    try:
        info = pltpu.get_tpu_info()
        cap = int(getattr(info, "vmem_capacity_bytes", cap))
    except Exception:
        pass
    return max(cap - 16 * 1024 * 1024, 32 * 1024 * 1024)


def _vmem_bytes(bb, bn, bk, x_item, w_item, o_item, use_scratch):
    # Double-buffered pipeline tiles + optional f32 accumulator scratch.
    tiles = bb * bk * x_item + bn * bk * w_item + bn * 4 + bb * bn * o_item
    return 2 * tiles + (bb * bn * 4 if use_scratch else 0)


# --------------------------------------------------------------------------
# Wrapper
# --------------------------------------------------------------------------

def dense_block(x, weight, bias, *, wscale_gain=float(np.sqrt(2.0)),
                wscale_lr_multiplier=0.01, activation_type='lrelu',
                block_b=None, block_n=None, block_k=None,
                mxu_dtype=jnp.bfloat16):
    """Pallas DenseBlock forward.

    Args:
      x:      [B, in_features]
      weight: [out_features, in_features]  (PyTorch nn.Linear convention;
              may already be bf16 for persistent low-precision storage)
      bias:   [out_features]               (WScaleLayer bias)
      mxu_dtype: dtype the MXU operands are cast to inside the kernel
                 (None -> keep input dtypes).
    Returns:
      [B, out_features] with x.dtype.
    """
    B, K = x.shape
    N = weight.shape[0]
    assert weight.shape == (N, K), weight.shape
    assert bias.shape == (N,), bias.shape

    # fan_in for the dense layer: in_features * kernel_size^2, kernel_size=1.
    scale = float(wscale_gain / np.sqrt(K) * wscale_lr_multiplier)
    if activation_type == 'lrelu':
        neg_slope = 0.2
    elif activation_type == 'linear':
        neg_slope = 1.0
    else:
        raise NotImplementedError(f'activation_type={activation_type!r}')

    out_dtype = x.dtype
    use_scratch = np.dtype(out_dtype) != np.dtype(np.float32)

    x_item = np.dtype(x.dtype).itemsize
    w_item = np.dtype(weight.dtype).itemsize
    o_item = np.dtype(out_dtype).itemsize

    budget = _vmem_budget_bytes()
    auto = (block_b is None and block_n is None and block_k is None)

    if block_b is None:
        block_b = _choose_block(B, 1024, aligns=(16, 8))      # bf16 packs [16,128]
    if block_n is None:
        block_n = _choose_block(N, 512, aligns=(256, 128))
    if block_k is None:
        block_k = _choose_block(K, 2048, aligns=(256, 128))

    if auto:
        # Guarantee >= 2 blocks on a *parallel* axis so both of v7x's
        # TensorCores get work; split N (weight still streamed only once).
        if (B // block_b) * (N // block_n) == 1 and N >= 256:
            half = _aligned_divisor(N, N // 2, aligns=(256, 128))
            if half is not None:
                block_n = half
        # Shrink tiles (K, then N, then B) until the pipeline fits the budget.
        while _vmem_bytes(block_b, block_n, block_k, x_item, w_item, o_item,
                          use_scratch) > budget:
            if block_k > 128:
                nk = _aligned_divisor(K, block_k // 2, aligns=(256, 128))
                if nk is not None and nk < block_k:
                    block_k = nk
                    continue
            if block_n > 128:
                nn_ = _aligned_divisor(N, block_n // 2, aligns=(256, 128))
                if nn_ is not None and nn_ < block_n:
                    block_n = nn_
                    continue
            if block_b > 16:
                nb = _aligned_divisor(B, block_b // 2, aligns=(16, 8))
                if nb is not None and nb < block_b:
                    block_b = nb
                    continue
            break

    assert B % block_b == 0 and N % block_n == 0 and K % block_k == 0, (
        (B, N, K, block_b, block_n, block_k))

    grid = (B // block_b, N // block_n, K // block_k)

    needed = _vmem_bytes(block_b, block_n, block_k, x_item, w_item, o_item,
                         use_scratch)
    vmem_limit = int(min(max(int(needed * 1.25), 32 * 1024 * 1024), budget))

    # Honest advisory traffic: x re-read per N tile, weight re-read per B tile.
    cost = pl.CostEstimate(
        flops=2 * B * K * N,
        transcendentals=0,
        bytes_accessed=int(B * K * x_item * grid[1]
                           + K * N * w_item * grid[0]
                           + B * N * o_item + N * 4))

    common = dict(scale=scale, lr_multiplier=float(wscale_lr_multiplier),
                  negative_slope=float(neg_slope), mxu_dtype=mxu_dtype)
    if use_scratch:
        kernel = functools.partial(_dense_kernel_scratch, **common)
        scratch_shapes = [pltpu.VMEM((block_b, block_n), jnp.float32)]
    else:
        kernel = functools.partial(_dense_kernel_inplace, **common)
        scratch_shapes = []

    b2d = bias.reshape(1, N).astype(jnp.float32)

    return pl.pallas_call(
        kernel,
        out_shape=jax.ShapeDtypeStruct((B, N), out_dtype),
        grid_spec=pltpu.PrefetchScalarGridSpec(
            num_scalar_prefetch=0,
            grid=grid,
            in_specs=[
                pl.BlockSpec((block_b, block_k), lambda i, j, k: (i, k)),
                pl.BlockSpec((block_n, block_k), lambda i, j, k: (j, k)),
                pl.BlockSpec((1, block_n), lambda i, j, k: (0, j)),
            ],
            out_specs=pl.BlockSpec((block_b, block_n), lambda i, j, k: (i, j)),
            scratch_shapes=scratch_shapes,
        ),
        compiler_params=pltpu.CompilerParams(
            dimension_semantics=("parallel", "parallel", "arbitrary"),
            vmem_limit_bytes=vmem_limit),
        cost_estimate=cost,
    )(x, weight, b2d)


# --------------------------------------------------------------------------
# Pure-f32 reference (matches the PyTorch module exactly)
# --------------------------------------------------------------------------

def _reference(x, weight, bias, *, wscale_gain=float(np.sqrt(2.0)),
               wscale_lr_multiplier=0.01, activation_type='lrelu'):
    K = x.shape[1]
    scale = wscale_gain / np.sqrt(K) * wscale_lr_multiplier
    y = jnp.dot(x.astype(jnp.float32), weight.astype(jnp.float32).T,
                preferred_element_type=jnp.float32)
    y = y * scale + bias.astype(jnp.float32).reshape(1, -1) * wscale_lr_multiplier
    if activation_type == 'lrelu':
        y = jnp.where(y >= 0, y, 0.2 * y)
    return y


if __name__ == "__main__":
    key = jax.random.PRNGKey(0)
    k1, k2, k3, k4, k5, k6 = jax.random.split(key, 6)

    # Case 1: small, spec-like shapes (single grid step), bf16 MXU path.
    B1, K1, N1 = 2, 32, 64
    x1 = jax.random.normal(k1, (B1, K1), dtype=jnp.float32)
    w1 = jax.random.normal(k2, (N1, K1), dtype=jnp.float32) * 0.1
    b1 = jax.random.normal(k3, (N1,), dtype=jnp.float32) * 0.5
    out1 = jax.block_until_ready(dense_block(x1, w1, b1))
    np.testing.assert_allclose(np.asarray(out1),
                               np.asarray(_reference(x1, w1, b1)),
                               rtol=2e-2, atol=1e-4)

    # Case 1b: f32 MXU operands + 'linear' activation (identity).
    out1f = jax.block_until_ready(
        dense_block(x1, w1, b1, mxu_dtype=None, activation_type='linear'))
    np.testing.assert_allclose(
        np.asarray(out1f),
        np.asarray(_reference(x1, w1, b1, activation_type='linear')),
        rtol=5e-3, atol=5e-5)

    # Case 2: auto tiling; the single parallel tile is split along N so a
    # v7x-style dual TensorCore gets two blocks (grid (1, 2, 1)).
    B2, K2, N2 = 16, 512, 512
    x2 = jax.random.normal(k4, (B2, K2), dtype=jnp.float32)
    w2 = jax.random.normal(k5, (N2, K2), dtype=jnp.float32) * 0.1
    b2 = jax.random.normal(k6, (N2,), dtype=jnp.float32) * 0.5
    out2 = jax.block_until_ready(dense_block(x2, w2, b2))
    ref2 = _reference(x2, w2, b2)
    np.testing.assert_allclose(np.asarray(out2), np.asarray(ref2),
                               rtol=2e-2, atol=1e-4)

    # Case 3: explicit small blocks -> exercises the K-reduction accumulation
    # path (grid (1, 4, 4)) with a persistently-stored bf16 weight (no wrapper
    # conversion pass, no in-kernel cast needed for W).
    out3 = jax.block_until_ready(
        dense_block(x2, w2.astype(jnp.bfloat16), b2,
                    block_b=16, block_n=128, block_k=128))
    np.testing.assert_allclose(np.asarray(out3), np.asarray(ref2),
                               rtol=2e-2, atol=2e-4)

    print("KERNEL_OK")
</pallas_src>

<mosaic_0001>
module attributes {stable_mosaic.version = 11 : i64} {
  func.func @_dense_kernel_inplace(%arg0: i32, %arg1: i32, %arg2: i32, %arg3: memref<2x32xf32, #tpu.memory_space<vmem>>, %arg4: memref<64x32xf32, #tpu.memory_space<vmem>>, %arg5: memref<1x64xf32, #tpu.memory_space<vmem>>, %arg6: memref<2x64xf32, #tpu.memory_space<vmem>>) attributes {dimension_semantics = [#tpu.dimension_semantics<parallel>, #tpu.dimension_semantics<parallel>, #tpu.dimension_semantics<arbitrary>], iteration_bounds = array<i64: 1, 1, 1>, scalar_prefetch = 0 : i64, scratch_operands = 0 : i64, tpu.core_type = #tpu.core_type<tc>, window_params = [{transform_indices = @transform_0, window_bounds = array<i64: 2, 32>}, {transform_indices = @transform_1, window_bounds = array<i64: 64, 32>}, {transform_indices = @transform_2, window_bounds = array<i64: 1, 64>}, {transform_indices = @transform_3, window_bounds = array<i64: 2, 64>}]} {
    %c0 = arith.constant 0 : index
    %c0_0 = arith.constant 0 : index
    %0 = vector.load %arg3[%c0, %c0_0] : memref<2x32xf32, #tpu.memory_space<vmem>>, vector<2x32xf32>
    %c0_1 = arith.constant 0 : index
    %c0_2 = arith.constant 0 : index
    %1 = vector.load %arg4[%c0_1, %c0_2] : memref<64x32xf32, #tpu.memory_space<vmem>>, vector<64x32xf32>
    %2 = arith.truncf %0 : vector<2x32xf32> to vector<2x32xbf16>
    %3 = arith.truncf %1 : vector<64x32xf32> to vector<64x32xbf16>
    %cst = arith.constant dense<0.000000e+00> : vector<2x64xf32>
    %4 = tpu.matmul %2, %3, %cst {dimension_numbers = #tpu.dot_dimension_numbers<[1], [1], [0], [0], [0, 0, 1, 0], [], []>} : vector<2x32xbf16>, vector<64x32xbf16>, vector<2x64xf32> -> vector<2x64xf32>
    %c0_i32 = arith.constant 0 : i32
    %5 = arith.cmpi eq, %arg2, %c0_i32 : i32
    %6 = arith.extui %5 : i1 to i32
    %c0_i32_3 = arith.constant 0 : i32
    %7 = arith.cmpi ne, %6, %c0_i32_3 : i32
    scf.if %7 {
      %c0_8 = arith.constant 0 : index
      %c0_9 = arith.constant 0 : index
      %14 = vector.load %arg6[%c0_8, %c0_9] : memref<2x64xf32, #tpu.memory_space<vmem>>, vector<2x64xf32>
      tpu.vector_store %arg6[%c0_8, %c0_9], %4 {strides = array<i32>} : memref<2x64xf32, #tpu.memory_space<vmem>>, vector<2x64xf32>,
    } else {
    }
    %c0_i32_4 = arith.constant 0 : i32
    %8 = arith.cmpi sgt, %arg2, %c0_i32_4 : i32
    %9 = arith.extui %8 : i1 to i32
    %c0_i32_5 = arith.constant 0 : i32
    %10 = arith.cmpi ne, %9, %c0_i32_5 : i32
    scf.if %10 {
      %c0_8 = arith.constant 0 : index
      %c0_9 = arith.constant 0 : index
      %14 = vector.load %arg6[%c0_8, %c0_9] : memref<2x64xf32, #tpu.memory_space<vmem>>, vector<2x64xf32>
      %15 = arith.addf %14, %4 : vector<2x64xf32>
      %c0_10 = arith.constant 0 : index
      %c0_11 = arith.constant 0 : index
      %16 = vector.load %arg6[%c0_10, %c0_11] : memref<2x64xf32, #tpu.memory_space<vmem>>, vector<2x64xf32>
      tpu.vector_store %arg6[%c0_10, %c0_11], %15 {strides = array<i32>} : memref<2x64xf32, #tpu.memory_space<vmem>>, vector<2x64xf32>,
    } else {
    }
    %c0_i32_6 = arith.constant 0 : i32
    %11 = arith.cmpi eq, %arg2, %c0_i32_6 : i32
    %12 = arith.extui %11 : i1 to i32
    %c0_i32_7 = arith.constant 0 : i32
    %13 = arith.cmpi ne, %12, %c0_i32_7 : i32
    scf.if %13 {
      %c0_8 = arith.constant 0 : index
      %c0_9 = arith.constant 0 : index
      %14 = vector.load %arg6[%c0_8, %c0_9] : memref<2x64xf32, #tpu.memory_space<vmem>>, vector<2x64xf32>
      %cst_10 = arith.constant 2.500000e-03 : f32
      %15 = vector.broadcast %cst_10 : f32 to vector<2x64xf32>
      %16 = arith.mulf %14, %15 : vector<2x64xf32>
      %c0_11 = arith.constant 0 : index
      %c0_12 = arith.constant 0 : index
      %17 = vector.load %arg5[%c0_11, %c0_12] : memref<1x64xf32, #tpu.memory_space<vmem>>, vector<1x64xf32>
      %cst_13 = arith.constant 0.00999999977 : f32
      %18 = vector.broadcast %cst_13 : f32 to vector<1x64xf32>
      %19 = arith.mulf %17, %18 : vector<1x64xf32>
      %20 = vector.broadcast %19 : vector<1x64xf32> to vector<2x64xf32>
      %21 = arith.addf %16, %20 : vector<2x64xf32>
      %cst_14 = arith.constant 0.000000e+00 : f32
      %22 = vector.broadcast %cst_14 : f32 to vector<2x64xf32>
      %23 = arith.cmpf oge, %21, %22 : vector<2x64xf32>
      %cst_15 = arith.constant 2.000000e-01 : f32
      %24 = vector.broadcast %cst_15 : f32 to vector<2x64xf32>
      %25 = arith.mulf %24, %21 : vector<2x64xf32>
      %26 = arith.select %23, %21, %25 : vector<2x64xi1>, vector<2x64xf32>
      %c0_16 = arith.constant 0 : index
      %c0_17 = arith.constant 0 : index
      %27 = vector.load %arg6[%c0_16, %c0_17] : memref<2x64xf32, #tpu.memory_space<vmem>>, vector<2x64xf32>
      tpu.vector_store %arg6[%c0_16, %c0_17], %26 {strides = array<i32>} : memref<2x64xf32, #tpu.memory_space<vmem>>, vector<2x64xf32>,
    } else {
    }
    return
  }
  func.func @transform_0(%arg0: i32, %arg1: i32, %arg2: i32) -> (i32, i32) {
    %c0_i32 = arith.constant 0 : i32
    return %arg0, %arg2 : i32, i32
  }
  func.func @transform_1(%arg0: i32, %arg1: i32, %arg2: i32) -> (i32, i32) {
    %c0_i32 = arith.constant 0 : i32
    return %arg1, %arg2 : i32, i32
  }
  func.func @transform_2(%arg0: i32, %arg1: i32, %arg2: i32) -> (i32, i32) {
    %c0_i32 = arith.constant 0 : i32
    %c0_i32_0 = arith.constant 0 : i32
    return %c0_i32, %arg1 : i32, i32
  }
  func.func @transform_3(%arg0: i32, %arg1: i32, %arg2: i32) -> (i32, i32) {
    %c0_i32 = arith.constant 0 : i32
    return %arg0, %arg1 : i32, i32
  }
}

</mosaic_0001>

<llo_original>
// kernel: tpu_custom_call.1
$region0: #{tpu_custom_call.1}
  #allocation0 [shape = 'u32[]', space=smem, size = 0x4, offset = 0x4, fixed_abs, tag = 'smem constant byte address 0x4 - core index']
  #allocation1 [shape = 'u32[144,128]{1,0:T(1,128)}', space=vmem, size = 0x12000, scoped, tag = 'internal scratch']
  %s0 = inlined_call_operand.vmem [shape: f32[2,32], index: 0, kind: input, shape index: {}]
  %s1 = inlined_call_operand.vmem [shape: f32[64,32], index: 1, kind: input, shape index: {}]
  %s2 = inlined_call_operand.vmem [shape: f32[1,64], index: 2, kind: input, shape index: {}]
  %s3 = inlined_call_operand.hbm [shape: f32[2,64], index: 3, kind: output, shape index: {}]
  %s4 = sld [smem:[#allocation0]]
  $region34: #{tpu_custom_call.1} parent=0
    _
  %s6 = ssub.s32 1, %s4
  %s7 = scalar_select 0, %s6, %s4
  $region1: #{tpu_custom_call.1} parent=0
    #allocation2 [shape = 'u8[1024]{0}', space=vmem, size = 0x400, scoped, tag = 'output window, operand 0, single buffered']
    #allocation3 [shape = 's32[1]{0}', space=sflag, size = 0x4, scoped, tag = 'scoped memory for tpu_custom_call.1']
    %8 = vsyncpa [#allocation3], 0
    // Predicated region
    $region2: #{tpu_custom_call.1} parent=1 // pred_check
      _
    $region3: #{tpu_custom_call.1} parent=1 // pred_check_branch
      %10 = sbr.rel (0) target = $region5
    $region4: #{tpu_custom_call.1} parent=1 // pred_region
      _
    $region5: #{tpu_custom_call.1} parent=1 // pred_fallthru
      _
    // Predicated region
    $region6: #{tpu_custom_call.1} parent=1 // pred_check
      _
    $region7: #{tpu_custom_call.1} parent=1 // pred_check_branch
      %12 = sbr.rel (0) target = $region9
    $region8: #{tpu_custom_call.1} parent=1 // pred_region
      _
    $region9: #{tpu_custom_call.1} parent=1 // pred_fallthru
      _
    // Predicated region
    $region10: #{tpu_custom_call.1} parent=1 // pred_check
      _
    $region11: #{tpu_custom_call.1} parent=1 // pred_check_branch
      %14 = sbr.rel (0) target = $region13
    $region12: #{tpu_custom_call.1} parent=1 // pred_region
      _
    $region13: #{tpu_custom_call.1} parent=1 // pred_fallthru
      _
    %v16 = vld [vmem:[%s0] sm:$0x3]
    %v17 = vld [vmem:[%s1] sm:$0xff]
    %v18 = vld [vmem:[%s1 + $0x8] sm:$0xff]
    %v19 = vld [vmem:[%s1 + $0x10] sm:$0xff]
    %v20 = vld [vmem:[%s1 + $0x18] sm:$0xff]
    %v21 = vld [vmem:[%s1 + $0x20] sm:$0xff]
    %v22 = vld [vmem:[%s1 + $0x28] sm:$0xff]
    %v23 = vld [vmem:[%s1 + $0x30] sm:$0xff]
    %v24 = vld [vmem:[%s1 + $0x38] sm:$0xff]
    %v25 = vpack.c.bf16 %v16, %v16
    %v26 = vpack.c.bf16 %v18, %v17
    %v27 = vpack.c.bf16 %v20, %v19
    %v28 = vpack.c.bf16 %v22, %v21
    %v29 = vpack.c.bf16 %v24, %v23
    %vm30 = vcmask 261120
    %v32 = vsel %vm30, %v25, 0
    %v35 = vsel %vm30, %v26, 0
    %v38 = vsel %vm30, %v27, 0
    %v41 = vsel %vm30, %v28, 0
    %v44 = vsel %vm30, %v29, 0
    %46 = vmatprep.subr.bf16.mxu0 0
    %47 = vmatpush1.bf16.xpose.msra.mxu0 %v35
    %48 = vmatprep.subr.bf16.mxu0 0
    %49 = vmatpush1.bf16.xpose.msra.mxu0 %v38
    %50 = vmatprep.subr.bf16.mxu0 0
    %51 = vmatpush1.bf16.xpose.msra.mxu0 %v41
    %52 = vmatprep.subr.bf16.mxu0 0
    %53 = vmatpush1.bf16.xpose.msra.mxu0 %v44
    %54 = vmatprep.subr.bf16.mxu0 0
    %55 = vmatpush1.bf16.xpose.msra.mxu0 0
    %56 = vmatprep.subr.bf16.mxu0 0
    %57 = vmatpush1.bf16.xpose.msra.mxu0 0
    %58 = vmatprep.subr.bf16.mxu0 0
    %59 = vmatpush1.bf16.xpose.msra.mxu0 0
    %60 = vmatprep.subr.bf16.mxu0 0
    %61 = vmatpush1.bf16.xpose.msra.mxu0 0
    %62 = vmatprep.subr.bf16.mxu0 0
    %63 = vmatpush1.bf16.xpose.msra.mxu0 0
    %64 = vmatprep.subr.bf16.mxu0 0
    %65 = vmatpush1.bf16.xpose.msra.mxu0 0
    %66 = vmatprep.subr.bf16.mxu0 0
    %67 = vmatpush1.bf16.xpose.msra.mxu0 0
    %68 = vmatprep.subr.bf16.mxu0 0
    %69 = vmatpush1.bf16.xpose.msra.mxu0 0
    %70 = vmatprep.subr.bf16.mxu0 0
    %71 = vmatpush1.bf16.xpose.msra.mxu0 0
    %72 = vmatprep.subr.bf16.mxu0 0
    %73 = vmatpush1.bf16.xpose.msra.mxu0 0
    %74 = vmatprep.subr.bf16.mxu0 0
    %75 = vmatpush1.bf16.xpose.msra.mxu0 0
    %76 = vmatprep.subr.bf16.mxu0 0
    %77 = vmatpush1.bf16.xpose.msra.mxu0 0
    %78 = vmatprep.mubr.bf16.mxu0 0
    %79 = vmatmul.mubr.bf16.gmra.mrb[0].mxu0 %v32
    %v80 = vpop.f32.mrb[0].mxu0
    %v81 = vadd.f32 0.0, %v80
    %v82 = vpop.f32.mrb[0].mxu0
    %v83 = vpop.f32.mrb[0].mxu0
    %v84 = vpop.f32.mrb[0].mxu0
    %85 = vdwg.mxu0
    %p86 = scmp.eq.s32.totalorder 0, 0
    // Predicated region
    $region14: #{tpu_custom_call.1} parent=1 // pred_check
      %p87 = pneg %p86
    $region15: #{tpu_custom_call.1} parent=1 // pred_check_branch
      %89 = sbr.rel (%p87) target = $region17
    $region16: #{tpu_custom_call.1} parent=1 // pred_region
      %vm90 = vcmask 517120
      %91 = vst.msk [vmem:[#allocation2] sm:$0x3] %vm90, %v81
    $region17: #{tpu_custom_call.1} parent=1 // pred_fallthru
      _
    %p92 = scmp.gt.s32.totalorder 0, 0
    // Predicated region
    $region18: #{tpu_custom_call.1} parent=1 // pred_check
      %p93 = pneg %p92
    $region19: #{tpu_custom_call.1} parent=1 // pred_check_branch
      %95 = sbr.rel (%p93) target = $region21
    $region20: #{tpu_custom_call.1} parent=1 // pred_region
      %v96 = vld [vmem:[#allocation2] sm:$0x3]
      %v97 = vadd.f32 %v96, %v81
      %vm98 = vcmask 517120
      %99 = vst.msk [vmem:[#allocation2] sm:$0x3] %vm98, %v97
    $region21: #{tpu_custom_call.1} parent=1 // pred_fallthru
      _
    // Predicated region
    $region22: #{tpu_custom_call.1} parent=1 // pred_check
      %p100 = pneg %p86
    $region23: #{tpu_custom_call.1} parent=1 // pred_check_branch
      %102 = sbr.rel (%p100) target = $region25
    $region24: #{tpu_custom_call.1} parent=1 // pred_region
      %v103 = vld [vmem:[#allocation2] sm:$0x3]
      %v104 = vmul.f32 %v103, 0.0025
      %v105 = vld [vmem:[%s2] sm:$0x1]
      %v106 = vmul.f32 %v105, 0.01
      %v108 = vlaneseq
      %v109 = vshrl.u32 %v108, 7
      %v110 = vsub.s32 0, %v109
      %v111 = vrot.slane %v106, %v110
      %v113 = vadd.f32 %v104, %v111
      %vm114 = vcmp.ge.f32.partialorder %v113, 0.0
      %v115 = vmul.f32 %v113, 0.2
      %v116 = vsel %vm114, %v113, %v115
      %vm117 = vcmask 517120
      %118 = vst.msk [vmem:[#allocation2] sm:$0x3] %vm117, %v116
    $region25: #{tpu_custom_call.1} parent=1 // pred_fallthru
      _
    // Predicated region
    $region26: #{tpu_custom_call.1} parent=1 // pred_check
      _
    $region27: #{tpu_custom_call.1} parent=1 // pred_check_branch
      %120 = sbr.rel (0) target = $region29
    $region28: #{tpu_custom_call.1} parent=1 // pred_region
      %s122 = ssub.s32 32, 32
      %123 = vsyncadd [#allocation3], %s122
      %s125 = sshll.u32 [#allocation2], 4
      %s126 = int_to_ptr.vmem [resolvable:$true] %s125
      %128 = dma.vmem_to_hbm [thread:$0]  %s126, 32, %s3, [#allocation3]
    $region29: #{tpu_custom_call.1} parent=1 // pred_fallthru
      _
    // Predicated region
    $region30: #{tpu_custom_call.1} parent=1 // pred_check
      _
    $region31: #{tpu_custom_call.1} parent=1 // pred_check_branch
      %130 = sbr.rel (0) target = $region33
    $region32: #{tpu_custom_call.1} parent=1 // pred_region
      %131 = dma.done [#allocation3], 32
    $region33: #{tpu_custom_call.1} parent=1 // pred_fallthru
      _
    %132 = vsyncpa [#allocation3], 1

</llo_original>
